<compile_context>
chip_gen: v7x
topology: tpu7x:2x2x1
jax: 0.10.0
libtpu: 0.0.40
codegen_flags: <defaults>
</compile_context>

<pallas_src>
import numpy as np

import jax
import jax.numpy as jnp
from jax.experimental import pallas as pl
from jax.experimental.pallas import tpu as pltpu


# --------------------------------------------------------------------------
# small padding / tiling helpers
# --------------------------------------------------------------------------
def _round_up(x, m):
    return ((x + m - 1) // m) * m


def _pad_dim(x, axis, target):
    if x.shape[axis] == target:
        return x
    pad = [(0, 0)] * x.ndim
    pad[axis] = (0, target - x.shape[axis])
    return jnp.pad(x, pad)


def _pad_rows(x, mult):
    return _pad_dim(x, 0, _round_up(x.shape[0], mult))


def _pad_lanes(x, mult=128):
    return _pad_dim(x, x.ndim - 1, _round_up(x.shape[-1], mult))


def _pick_ktile(K, desired):
    """Pick a contraction tile: multiple of 128 that divides the padded K."""
    Kp = _round_up(K, 128)
    tk = _round_up(min(desired, Kp), 128)
    Kp = _round_up(Kp, tk)
    return tk, Kp


def _chip_defaults():
    """Per-generation tile choices (from the perf review):
       * block_m: 256 on v6e/v7x (256-wide MXU), 128 on v5e (4x128^2 MXU)
       * fc6/ufc6 K-tile: 1792 with 128 MiB VMEM (v5e/v6e), 896 on v7x (64 MiB)
       * explicit vmem_limit_bytes: ~100 MiB on v5e/v6e, ~56 MiB on v7x
    """
    vmem_cap = 64 << 20
    try:
        vmem_cap = int(pltpu.get_tpu_info().vmem_capacity_bytes)
    except Exception:
        pass
    block_m = 256
    try:
        kind = jax.devices()[0].device_kind.lower()
        if "v5 lite" in kind or "v5e" in kind or "v5lite" in kind:
            block_m = 128
    except Exception:
        pass
    fc6_ktile = 1792 if vmem_cap > (64 << 20) else 896
    vmem_limit = int(min(vmem_cap - (8 << 20), 100 << 20))
    return block_m, fc6_ktile, vmem_limit


def _invariant_spec(shape):
    """Grid-invariant resident operand (index_map -> (0, 0)).

    Single-buffered (pl.Buffered(1)): unchanged blocks are never re-DMA'd, and
    not reserving a second pipeline buffer for the big resident fc7/classifier
    weights is what keeps the box-head call inside v7x's 64 MiB VMEM at
    production pysgg sizes."""
    idx = lambda i, k: (0, 0)
    try:
        return pl.BlockSpec(shape, idx, pipeline_mode=pl.Buffered(1))
    except Exception:  # older jax without pipeline_mode: default double-buffer
        return pl.BlockSpec(shape, idx)


# --------------------------------------------------------------------------
# Pallas kernels
# --------------------------------------------------------------------------
def _box_head_kernel(x_ref, w6_ref, b6_ref, w7_ref, b7_ref, wo_ref, bo_ref,
                     feat_ref, logit_ref, acc_ref):
    """K-tiled fc6 accumulation; fc7 -> relu -> obj classifier as epilogue."""
    k = pl.program_id(1)

    @pl.when(k == 0)
    def _():
        acc_ref[...] = jnp.zeros_like(acc_ref)

    acc_ref[...] += jnp.dot(x_ref[...], w6_ref[...],
                            preferred_element_type=jnp.float32)

    @pl.when(k == pl.num_programs(1) - 1)
    def _():
        h = jnp.maximum(acc_ref[...] + b6_ref[...], 0.0).astype(jnp.bfloat16)
        f = jnp.dot(h, w7_ref[...], preferred_element_type=jnp.float32)
        f = jnp.maximum(f + b7_ref[...], 0.0)
        feat_ref[...] = f.astype(feat_ref.dtype)
        # object-refine classifier fused as epilogue (lane-padded to 128 cols)
        logit_ref[...] = (jnp.dot(f.astype(jnp.bfloat16), wo_ref[...],
                                  preferred_element_type=jnp.float32)
                          + bo_ref[...]).astype(logit_ref.dtype)


def box_head_forward(pooled, w6, b6, w7, b7, wobj, bobj, *,
                     block_m, fc6_ktile, vmem_limit):
    M, K = pooled.shape
    H = w7.shape[1]
    No = wobj.shape[1]

    # small-M guard: don't pad a handful of ROIs up to a 256-row MXU tile.
    bm = min(block_m, _round_up(M, 8))
    tk, Kp = _pick_ktile(K, fc6_ktile)

    x = _pad_dim(_pad_rows(pooled.astype(jnp.bfloat16), bm), 1, Kp)
    w6 = _pad_dim(w6, 0, Kp)
    Mp = x.shape[0]
    n_i, n_k = Mp // bm, Kp // tk

    flops = 2 * Mp * (Kp * H + H * H + H * No)
    bytes_accessed = (Mp * Kp + Kp * H + H * H + H * No + Mp * H) * 2 + Mp * No * 4

    feat, logits = pl.pallas_call(
        _box_head_kernel,
        out_shape=(jax.ShapeDtypeStruct((Mp, H), jnp.bfloat16),
                   jax.ShapeDtypeStruct((Mp, No), jnp.float32)),
        grid_spec=pltpu.PrefetchScalarGridSpec(
            num_scalar_prefetch=0,
            grid=(n_i, n_k),
            in_specs=[
                pl.BlockSpec((bm, tk), lambda i, k: (i, k)),   # pooled (K-tiled)
                pl.BlockSpec((tk, H), lambda i, k: (k, 0)),    # fc6 W  (K-tiled)
                pl.BlockSpec((1, H), lambda i, k: (0, 0)),     # fc6 b
                _invariant_spec((H, H)),                       # fc7 W  resident, 1-buf
                pl.BlockSpec((1, H), lambda i, k: (0, 0)),     # fc7 b
                _invariant_spec((H, No)),                      # obj clf W
                pl.BlockSpec((1, No), lambda i, k: (0, 0)),    # obj clf b
            ],
            out_specs=[pl.BlockSpec((bm, H), lambda i, k: (i, 0)),
                       pl.BlockSpec((bm, No), lambda i, k: (i, 0))],
            scratch_shapes=[pltpu.VMEM((bm, H), jnp.float32)],
        ),
        compiler_params=pltpu.CompilerParams(
            dimension_semantics=("parallel", "arbitrary"),
            vmem_limit_bytes=int(vmem_limit)),
        cost_estimate=pl.CostEstimate(flops=int(flops), transcendentals=0,
                                      bytes_accessed=int(bytes_accessed)),
    )(x, w6, b6, w7, b7, wobj, bobj)
    return feat[:M], logits[:M]


def _mlp2_kernel(x_ref, w6_ref, b6_ref, w7_ref, b7_ref, o_ref, acc_ref):
    """ufc6 (K-tiled) -> relu -> ufc7 -> relu (union feature extractor)."""
    k = pl.program_id(1)

    @pl.when(k == 0)
    def _():
        acc_ref[...] = jnp.zeros_like(acc_ref)

    acc_ref[...] += jnp.dot(x_ref[...], w6_ref[...],
                            preferred_element_type=jnp.float32)

    @pl.when(k == pl.num_programs(1) - 1)
    def _():
        h = jnp.maximum(acc_ref[...] + b6_ref[...], 0.0).astype(jnp.bfloat16)
        f = jnp.dot(h, w7_ref[...], preferred_element_type=jnp.float32)
        o_ref[...] = jnp.maximum(f + b7_ref[...], 0.0).astype(o_ref.dtype)


def mlp2_forward(x_in, w6, b6, w7, b7, *, block_m, fc6_ktile, vmem_limit):
    M, K = x_in.shape
    H = w7.shape[1]
    bm = min(block_m, _round_up(M, 8))
    tk, Kp = _pick_ktile(K, fc6_ktile)

    x = _pad_dim(_pad_rows(x_in.astype(jnp.bfloat16), bm), 1, Kp)
    w6 = _pad_dim(w6, 0, Kp)
    Mp = x.shape[0]
    n_i, n_k = Mp // bm, Kp // tk

    flops = 2 * Mp * (Kp * H + H * H)
    bytes_accessed = (Mp * Kp + Kp * H + H * H + Mp * H) * 2

    out = pl.pallas_call(
        _mlp2_kernel,
        out_shape=jax.ShapeDtypeStruct((Mp, H), jnp.bfloat16),
        grid_spec=pltpu.PrefetchScalarGridSpec(
            num_scalar_prefetch=0,
            grid=(n_i, n_k),
            in_specs=[
                pl.BlockSpec((bm, tk), lambda i, k: (i, k)),
                pl.BlockSpec((tk, H), lambda i, k: (k, 0)),
                pl.BlockSpec((1, H), lambda i, k: (0, 0)),
                _invariant_spec((H, H)),
                pl.BlockSpec((1, H), lambda i, k: (0, 0)),
            ],
            out_specs=pl.BlockSpec((bm, H), lambda i, k: (i, 0)),
            scratch_shapes=[pltpu.VMEM((bm, H), jnp.float32)],
        ),
        compiler_params=pltpu.CompilerParams(
            dimension_semantics=("parallel", "arbitrary"),
            vmem_limit_bytes=int(vmem_limit)),
        cost_estimate=pl.CostEstimate(flops=int(flops), transcendentals=0,
                                      bytes_accessed=int(bytes_accessed)),
    )(x, w6, b6, w7, b7)
    return out[:M]


def _rel_pair_kernel(sid_ref, oid_ref, feat_ref, u_ref,
                     wps_ref, wpo_ref, bp_ref, wr_ref, br_ref,
                     logit_ref, acc_ref):
    """Pairwise predictor with in-kernel subj/obj gather.

    h = relu(subj @ Wps + obj @ Wpo + b); h *= union; logits = h @ Wr + br.
    The Wps/Wpo contraction (hidden dim) is grid-tiled; the row gather is a
    one-hot selection matmul against the roi_features column tile, so the
    [num_pairs, hidden] gathered copies never round-trip through HBM."""
    k = pl.program_id(1)

    @pl.when(k == 0)
    def _():
        acc_ref[...] = jnp.zeros_like(acc_ref)

    bm = sid_ref.shape[0]
    r_pad = feat_ref.shape[0]
    rows = jax.lax.broadcasted_iota(jnp.int32, (bm, r_pad), 1)
    sel_s = (rows == sid_ref[...]).astype(jnp.bfloat16)
    sel_o = (rows == oid_ref[...]).astype(jnp.bfloat16)
    feat_k = feat_ref[...]
    s_k = jnp.dot(sel_s, feat_k,
                  preferred_element_type=jnp.float32).astype(jnp.bfloat16)
    o_k = jnp.dot(sel_o, feat_k,
                  preferred_element_type=jnp.float32).astype(jnp.bfloat16)

    acc_ref[...] += jnp.dot(s_k, wps_ref[...], preferred_element_type=jnp.float32)
    acc_ref[...] += jnp.dot(o_k, wpo_ref[...], preferred_element_type=jnp.float32)

    @pl.when(k == pl.num_programs(1) - 1)
    def _():
        h = jnp.maximum(acc_ref[...] + bp_ref[...], 0.0)
        h = h * u_ref[...].astype(jnp.float32)       # PREDICT_USE_VISION gating
        logit_ref[...] = (jnp.dot(h.astype(jnp.bfloat16), wr_ref[...],
                                  preferred_element_type=jnp.float32)
                          + br_ref[...]).astype(logit_ref.dtype)


def rel_pair_predict(pair_idx, roi_feat, union_feat, wps, wpo, bp, wr, br, *,
                     block_m, pair_ktile, vmem_limit):
    P = pair_idx.shape[0]
    D = roi_feat.shape[1]
    Rp = wr.shape[1]

    bm = min(block_m, _round_up(P, 8))
    tk, Dp = _pick_ktile(D, pair_ktile)

    sid = _pad_rows(pair_idx[:, 0:1].astype(jnp.int32), bm)
    oid = _pad_rows(pair_idx[:, 1:2].astype(jnp.int32), bm)
    u = _pad_rows(union_feat.astype(jnp.bfloat16), bm)
    feat = _pad_dim(_pad_rows(roi_feat.astype(jnp.bfloat16), 16), 1, Dp)
    wps = _pad_dim(wps, 0, Dp)
    wpo = _pad_dim(wpo, 0, Dp)
    Pp = sid.shape[0]
    R_pad = feat.shape[0]
    n_i, n_k = Pp // bm, Dp // tk

    flops = 2 * Pp * (2 * R_pad * Dp + 2 * Dp * D + D * Rp)
    bytes_accessed = ((Pp * D + n_i * R_pad * Dp + 2 * Dp * D + D * Rp) * 2
                      + Pp * Rp * 4 + 2 * Pp * 4)

    out = pl.pallas_call(
        _rel_pair_kernel,
        out_shape=jax.ShapeDtypeStruct((Pp, Rp), jnp.float32),
        grid_spec=pltpu.PrefetchScalarGridSpec(
            num_scalar_prefetch=0,
            grid=(n_i, n_k),
            in_specs=[
                pl.BlockSpec((bm, 1), lambda i, k: (i, 0)),      # subj row idx
                pl.BlockSpec((bm, 1), lambda i, k: (i, 0)),      # obj  row idx
                pl.BlockSpec((R_pad, tk), lambda i, k: (0, k)),  # roi_features cols
                pl.BlockSpec((bm, D), lambda i, k: (i, 0)),      # union features
                pl.BlockSpec((tk, D), lambda i, k: (k, 0)),      # W_post (subj half)
                pl.BlockSpec((tk, D), lambda i, k: (k, 0)),      # W_post (obj half)
                pl.BlockSpec((1, D), lambda i, k: (0, 0)),       # b_post
                _invariant_spec((D, Rp)),                        # rel clf W
                pl.BlockSpec((1, Rp), lambda i, k: (0, 0)),      # rel clf b
            ],
            out_specs=pl.BlockSpec((bm, Rp), lambda i, k: (i, 0)),
            scratch_shapes=[pltpu.VMEM((bm, D), jnp.float32)],
        ),
        compiler_params=pltpu.CompilerParams(
            dimension_semantics=("parallel", "arbitrary"),
            vmem_limit_bytes=int(vmem_limit)),
        cost_estimate=pl.CostEstimate(flops=int(flops), transcendentals=0,
                                      bytes_accessed=int(bytes_accessed)),
    )(sid, oid, feat, u, wps, wpo, bp, wr, br)
    return out[:P]


# --------------------------------------------------------------------------
# Plain-JAX glue: ROIAlign (single level), test-pair enumeration
# --------------------------------------------------------------------------
# TODO(synk): exact ROIAlign with adaptive sampling-ratio and FPN multi-level
# pooler assignment is an irregular gather with no clean Pallas equivalent;
# here we bilinear-sample one point per bin on a single feature level in JAX.
def roi_align(feat_nchw, boxes, image_idx, out_size, spatial_scale):
    B, C, H, W = feat_nchw.shape
    P = out_size
    b = boxes * spatial_scale
    x1, y1, x2, y2 = b[:, 0], b[:, 1], b[:, 2], b[:, 3]
    bw = jnp.maximum(x2 - x1, 1e-3)
    bh = jnp.maximum(y2 - y1, 1e-3)
    cc = (jnp.arange(P, dtype=jnp.float32) + 0.5) / P
    sx = x1[:, None] + cc[None, :] * bw[:, None]          # [N, P]
    sy = y1[:, None] + cc[None, :] * bh[:, None]          # [N, P]
    ys = jnp.broadcast_to(sy[:, :, None], (sy.shape[0], P, P)) - 0.5
    xs = jnp.broadcast_to(sx[:, None, :], (sx.shape[0], P, P)) - 0.5

    def sample_one(img_i, ys_i, xs_i):
        feat = feat_nchw[img_i]                           # [C, H, W]
        y0 = jnp.floor(ys_i)
        x0 = jnp.floor(xs_i)
        ly = ys_i - y0
        lx = xs_i - x0
        y0c = jnp.clip(y0, 0, H - 1).astype(jnp.int32)
        x0c = jnp.clip(x0, 0, W - 1).astype(jnp.int32)
        y1c = jnp.clip(y0 + 1, 0, H - 1).astype(jnp.int32)
        x1c = jnp.clip(x0 + 1, 0, W - 1).astype(jnp.int32)
        v00 = feat[:, y0c, x0c]
        v01 = feat[:, y0c, x1c]
        v10 = feat[:, y1c, x0c]
        v11 = feat[:, y1c, x1c]
        w00 = (1 - ly) * (1 - lx)
        w01 = (1 - ly) * lx
        w10 = ly * (1 - lx)
        w11 = ly * lx
        return v00 * w00 + v01 * w01 + v10 * w10 + v11 * w11   # [C, P, P]

    pooled = jax.vmap(sample_one)(image_idx, ys, xs)       # [N, C, P, P]
    # Emit bf16 directly: halves pooled-feature HBM bytes and removes the
    # separate cast pass the MXU kernels would otherwise force.
    return pooled.reshape(pooled.shape[0], -1).astype(jnp.bfloat16)


def prepare_test_pairs(n):
    pairs = [(i, j) for i in range(n) for j in range(n) if i != j]
    return jnp.asarray(np.array(pairs, dtype=np.int32))


# --------------------------------------------------------------------------
# one-time parameter prep: bf16 weights, (1,N) biases, lane-pad classifiers
# --------------------------------------------------------------------------
def prepare_params(params):
    # TODO(synk): on v7x, fp8(e4m3) weights for fc6/fc7/ufc6/ufc7 would double
    # MXU throughput and halve weight VMEM/HBM if accuracy allows.
    bf = lambda w: w.astype(jnp.bfloat16)
    b2 = lambda b: b.reshape(1, -1).astype(jnp.float32)
    return {
        "fc6_w": bf(params["fc6_w"]), "fc6_b": b2(params["fc6_b"]),
        "fc7_w": bf(params["fc7_w"]), "fc7_b": b2(params["fc7_b"]),
        "ufc6_w": bf(params["ufc6_w"]), "ufc6_b": b2(params["ufc6_b"]),
        "ufc7_w": bf(params["ufc7_w"]), "ufc7_b": b2(params["ufc7_b"]),
        # classifiers lane-padded to 128 with zero weight/bias columns
        "obj_w": bf(_pad_lanes(params["obj_w"])),
        "obj_b": _pad_lanes(b2(params["obj_b"])),
        "post_ws": bf(params["post_ws"]),
        "post_wo": bf(params["post_wo"]),
        "post_b": b2(params["post_b"]),
        "rel_w": bf(_pad_lanes(params["rel_w"])),
        "rel_b": _pad_lanes(b2(params["rel_b"])),
    }


# --------------------------------------------------------------------------
# ROIRelationHead forward (eval, predcls mode, PREDICT_USE_VISION=True)
# --------------------------------------------------------------------------
def roi_relation_head_forward(features, proposals, params, cfg):
    num_obj_cls = cfg["num_obj_cls"]
    num_rel_cls = cfg["num_rel_cls"]
    block_m, fc6_ktile, vmem_limit = _chip_defaults()
    p = prepare_params(params)

    all_boxes = jnp.concatenate([pr["boxes"] for pr in proposals], 0)
    all_labels = jnp.concatenate([pr["labels"] for pr in proposals], 0)
    img_idx = jnp.concatenate(
        [jnp.full((pr["boxes"].shape[0],), i, jnp.int32)
         for i, pr in enumerate(proposals)], 0)

    # --- predcls: attach GT-label fields -----------------------------------
    predict_logits = jax.nn.one_hot(all_labels, num_obj_cls, dtype=jnp.float32)
    pred_scores = jnp.ones((all_boxes.shape[0],), jnp.float32)
    pred_labels = all_labels

    # --- box feature extractor + fused obj-refine classifier ----------------
    pooled = roi_align(features, all_boxes, img_idx,
                       cfg["pooler_resolution"], cfg["spatial_scale"])
    roi_features, obj_logits_padded = box_head_forward(
        pooled, p["fc6_w"], p["fc6_b"], p["fc7_w"], p["fc7_b"],
        p["obj_w"], p["obj_b"],
        block_m=block_m, fc6_ktile=fc6_ktile, vmem_limit=vmem_limit)
    obj_refine_logits = obj_logits_padded[:, :num_obj_cls]

    # --- test rel-pair enumeration (all ordered pairs per image) -----------
    rel_pair_idxs = []
    offset = 0
    for pr in proposals:
        n = pr["boxes"].shape[0]
        rel_pair_idxs.append(prepare_test_pairs(n) + offset)
        offset += n
    all_pairs = jnp.concatenate(rel_pair_idxs, 0)

    # --- union feature extractor --------------------------------------------
    subj_boxes = all_boxes[all_pairs[:, 0]]
    obj_boxes = all_boxes[all_pairs[:, 1]]
    union_boxes = jnp.concatenate(
        [jnp.minimum(subj_boxes[:, :2], obj_boxes[:, :2]),
         jnp.maximum(subj_boxes[:, 2:], obj_boxes[:, 2:])], axis=1)
    pair_img_idx = img_idx[all_pairs[:, 0]]
    u_pooled = roi_align(features, union_boxes, pair_img_idx,
                         cfg["pooler_resolution"], cfg["spatial_scale"])
    # TODO(synk): rect_conv (rasterized subject/object mask) branch of the
    # RelationFeatureExtractor is omitted in this synthetic kernel.
    union_features = mlp2_forward(u_pooled, p["ufc6_w"], p["ufc6_b"],
                                  p["ufc7_w"], p["ufc7_b"],
                                  block_m=block_m, fc6_ktile=fc6_ktile,
                                  vmem_limit=vmem_limit)

    # --- predictor (pairwise path; subj/obj gather happens IN the kernel) ---
    rel_logits_padded = rel_pair_predict(
        all_pairs, roi_features, union_features,
        p["post_ws"], p["post_wo"], p["post_b"],
        p["rel_w"], p["rel_b"],
        block_m=block_m, pair_ktile=512, vmem_limit=vmem_limit)
    relation_logits = rel_logits_padded[:, :num_rel_cls]

    # --- post processor (eval) ----------------------------------------------
    obj_class_prob = jax.nn.softmax(obj_refine_logits, axis=-1)
    rel_class_prob = jax.nn.softmax(relation_logits, axis=-1)
    result = {
        "rel_pair_idxs": all_pairs,
        "relation_logits": relation_logits,
        "rel_class_prob": rel_class_prob,
        "obj_refine_logits": obj_refine_logits,
        "obj_class_prob": obj_class_prob,
        "predict_logits": predict_logits,
        "pred_scores": pred_scores,
        "pred_labels": pred_labels,
    }
    # eval: losses dict is empty (training sampling / loss_evaluator not run)
    # TODO(synk): training-time relsample / loss_evaluator / rel_pn have no
    # clean Pallas equivalent (data-dependent sampling & CE losses) and are
    # out of scope for this inference kernel.
    return roi_features, result, {}


# --------------------------------------------------------------------------
# Deterministic parameter init
# --------------------------------------------------------------------------
def init_params(key, in_dim, hidden, num_obj_cls, num_rel_cls):
    ks = jax.random.split(key, 8)

    def w(k, shape, scale=0.02):
        return jax.random.normal(k, shape, jnp.float32) * scale

    return {
        "fc6_w": w(ks[0], (in_dim, hidden)), "fc6_b": jnp.zeros((hidden,), jnp.float32),
        "fc7_w": w(ks[1], (hidden, hidden)), "fc7_b": jnp.zeros((hidden,), jnp.float32),
        "ufc6_w": w(ks[2], (in_dim, hidden)), "ufc6_b": jnp.zeros((hidden,), jnp.float32),
        "ufc7_w": w(ks[3], (hidden, hidden)), "ufc7_b": jnp.zeros((hidden,), jnp.float32),
        "obj_w": w(ks[4], (hidden, num_obj_cls)), "obj_b": jnp.zeros((num_obj_cls,), jnp.float32),
        "post_ws": w(ks[5], (hidden, hidden)),
        "post_wo": w(ks[6], (hidden, hidden)),
        "post_b": jnp.zeros((hidden,), jnp.float32),
        "rel_w": w(ks[7], (hidden, num_rel_cls)), "rel_b": jnp.zeros((num_rel_cls,), jnp.float32),
    }


# --------------------------------------------------------------------------
if __name__ == "__main__":
    key = jax.random.PRNGKey(0)
    k_feat, k_box, k_lab, k_par = jax.random.split(key, 4)

    cfg = dict(num_obj_cls=32, num_rel_cls=16,
               pooler_resolution=4, spatial_scale=0.25)

    B, C, H, W = 2, 16, 16, 16          # NCHW feature maps
    N = 4                               # proposals per image
    img_size = 64.0                     # image coords; spatial_scale = 16/64

    features = jax.random.normal(k_feat, (B, C, H, W), jnp.float32)

    proposals = []
    kbs = jax.random.split(k_box, B)
    kls = jax.random.split(k_lab, B)
    for i in range(B):
        xy = jax.random.uniform(kbs[i], (N, 2), minval=0.0, maxval=img_size / 2)
        wh = jax.random.uniform(jax.random.fold_in(kbs[i], 1), (N, 2),
                                minval=8.0, maxval=img_size / 2)
        boxes = jnp.concatenate([xy, jnp.minimum(xy + wh, img_size - 1.0)], axis=1)
        labels = jax.random.randint(kls[i], (N,), 1, cfg["num_obj_cls"])
        proposals.append({"boxes": boxes, "labels": labels})

    in_dim = C * cfg["pooler_resolution"] ** 2   # 16 * 4 * 4 = 256
    hidden = 128                                 # fc6/fc7 / pooling dim
    params = init_params(k_par, in_dim, hidden,
                         cfg["num_obj_cls"], cfg["num_rel_cls"])

    roi_features, result, losses = roi_relation_head_forward(
        features, proposals, params, cfg)

    jax.block_until_ready(roi_features)
    jax.block_until_ready(result["rel_class_prob"])
    jax.block_until_ready(result["obj_class_prob"])

    assert roi_features.shape == (B * N, hidden)
    assert result["relation_logits"].shape == (B * N * (N - 1), cfg["num_rel_cls"])
    assert result["obj_refine_logits"].shape == (B * N, cfg["num_obj_cls"])
    assert losses == {}
    print("KERNEL_OK")
</pallas_src>

<mosaic_0001>
module attributes {stable_mosaic.version = 11 : i64} {
  func.func @_box_head_kernel(%arg0: i32, %arg1: i32, %arg2: memref<8x256xbf16, #tpu.memory_space<vmem>>, %arg3: memref<256x128xbf16, #tpu.memory_space<vmem>>, %arg4: memref<1x128xf32, #tpu.memory_space<vmem>>, %arg5: memref<128x128xbf16, #tpu.memory_space<vmem>>, %arg6: memref<1x128xf32, #tpu.memory_space<vmem>>, %arg7: memref<128x128xbf16, #tpu.memory_space<vmem>>, %arg8: memref<1x128xf32, #tpu.memory_space<vmem>>, %arg9: memref<8x128xbf16, #tpu.memory_space<vmem>>, %arg10: memref<8x128xf32, #tpu.memory_space<vmem>>, %arg11: memref<8x128xf32, #tpu.memory_space<vmem>>) attributes {dimension_semantics = [#tpu.dimension_semantics<parallel>, #tpu.dimension_semantics<arbitrary>], iteration_bounds = array<i64: 1, 1>, scalar_prefetch = 0 : i64, scratch_operands = 1 : i64, tpu.core_type = #tpu.core_type<tc>, window_params = [{transform_indices = @transform_0, window_bounds = array<i64: 8, 256>}, {transform_indices = @transform_1, window_bounds = array<i64: 256, 128>}, {pipeline_mode = #tpu.pipeline_mode<synchronous>, transform_indices = @transform_2, window_bounds = array<i64: 1, 128>}, {pipeline_mode = #tpu.pipeline_mode<synchronous>, transform_indices = @transform_3, window_bounds = array<i64: 128, 128>}, {pipeline_mode = #tpu.pipeline_mode<synchronous>, transform_indices = @transform_4, window_bounds = array<i64: 1, 128>}, {pipeline_mode = #tpu.pipeline_mode<synchronous>, transform_indices = @transform_5, window_bounds = array<i64: 128, 128>}, {pipeline_mode = #tpu.pipeline_mode<synchronous>, transform_indices = @transform_6, window_bounds = array<i64: 1, 128>}, {transform_indices = @transform_7, window_bounds = array<i64: 8, 128>}, {transform_indices = @transform_8, window_bounds = array<i64: 8, 128>}]} {
    %c0_i32 = arith.constant 0 : i32
    %0 = arith.cmpi eq, %arg1, %c0_i32 : i32
    %1 = arith.extui %0 : i1 to i32
    %c0_i32_0 = arith.constant 0 : i32
    %2 = arith.cmpi ne, %1, %c0_i32_0 : i32
    scf.if %2 {
      %cst_10 = arith.constant 0.000000e+00 : f32
      %12 = vector.broadcast %cst_10 : f32 to vector<8x128xf32>
      %c0_11 = arith.constant 0 : index
      %c0_12 = arith.constant 0 : index
      %13 = vector.load %arg11[%c0_11, %c0_12] : memref<8x128xf32, #tpu.memory_space<vmem>>, vector<8x128xf32>
      tpu.vector_store %arg11[%c0_11, %c0_12], %12 {strides = array<i32>} : memref<8x128xf32, #tpu.memory_space<vmem>>, vector<8x128xf32>,
    } else {
    }
    %c0 = arith.constant 0 : index
    %c0_1 = arith.constant 0 : index
    %3 = vector.load %arg11[%c0, %c0_1] : memref<8x128xf32, #tpu.memory_space<vmem>>, vector<8x128xf32>
    %c0_2 = arith.constant 0 : index
    %c0_3 = arith.constant 0 : index
    %4 = vector.load %arg2[%c0_2, %c0_3] : memref<8x256xbf16, #tpu.memory_space<vmem>>, vector<8x256xbf16>
    %c0_4 = arith.constant 0 : index
    %c0_5 = arith.constant 0 : index
    %5 = vector.load %arg3[%c0_4, %c0_5] : memref<256x128xbf16, #tpu.memory_space<vmem>>, vector<256x128xbf16>
    %cst = arith.constant dense<0.000000e+00> : vector<8x128xf32>
    %6 = tpu.matmul %4, %5, %cst {dimension_numbers = #tpu.dot_dimension_numbers<[1], [0], [0], [1], [0, 0, 1, 1], [], []>} : vector<8x256xbf16>, vector<256x128xbf16>, vector<8x128xf32> -> vector<8x128xf32>
    %7 = arith.addf %3, %6 : vector<8x128xf32>
    %c0_6 = arith.constant 0 : index
    %c0_7 = arith.constant 0 : index
    %8 = vector.load %arg11[%c0_6, %c0_7] : memref<8x128xf32, #tpu.memory_space<vmem>>, vector<8x128xf32>
    tpu.vector_store %arg11[%c0_6, %c0_7], %7 {strides = array<i32>} : memref<8x128xf32, #tpu.memory_space<vmem>>, vector<8x128xf32>,
    %c0_i32_8 = arith.constant 0 : i32
    %9 = arith.cmpi eq, %arg1, %c0_i32_8 : i32
    %10 = arith.extui %9 : i1 to i32
    %c0_i32_9 = arith.constant 0 : i32
    %11 = arith.cmpi ne, %10, %c0_i32_9 : i32
    scf.if %11 {
      %c0_10 = arith.constant 0 : index
      %c0_11 = arith.constant 0 : index
      %12 = vector.load %arg11[%c0_10, %c0_11] : memref<8x128xf32, #tpu.memory_space<vmem>>, vector<8x128xf32>
      %c0_12 = arith.constant 0 : index
      %c0_13 = arith.constant 0 : index
      %13 = vector.load %arg4[%c0_12, %c0_13] : memref<1x128xf32, #tpu.memory_space<vmem>>, vector<1x128xf32>
      %14 = vector.broadcast %13 : vector<1x128xf32> to vector<8x128xf32>
      %15 = arith.addf %12, %14 : vector<8x128xf32>
      %cst_14 = arith.constant 0.000000e+00 : f32
      %16 = vector.broadcast %cst_14 : f32 to vector<8x128xf32>
      %17 = arith.maximumf %15, %16 : vector<8x128xf32>
      %18 = arith.truncf %17 : vector<8x128xf32> to vector<8x128xbf16>
      %c0_15 = arith.constant 0 : index
      %c0_16 = arith.constant 0 : index
      %19 = vector.load %arg5[%c0_15, %c0_16] : memref<128x128xbf16, #tpu.memory_space<vmem>>, vector<128x128xbf16>
      %cst_17 = arith.constant dense<0.000000e+00> : vector<8x128xf32>
      %20 = tpu.matmul %18, %19, %cst_17 {dimension_numbers = #tpu.dot_dimension_numbers<[1], [0], [0], [1], [0, 0, 1, 1], [], []>} : vector<8x128xbf16>, vector<128x128xbf16>, vector<8x128xf32> -> vector<8x128xf32>
      %c0_18 = arith.constant 0 : index
      %c0_19 = arith.constant 0 : index
      %21 = vector.load %arg6[%c0_18, %c0_19] : memref<1x128xf32, #tpu.memory_space<vmem>>, vector<1x128xf32>
      %22 = vector.broadcast %21 : vector<1x128xf32> to vector<8x128xf32>
      %23 = arith.addf %20, %22 : vector<8x128xf32>
      %cst_20 = arith.constant 0.000000e+00 : f32
      %24 = vector.broadcast %cst_20 : f32 to vector<8x128xf32>
      %25 = arith.maximumf %23, %24 : vector<8x128xf32>
      %26 = arith.truncf %25 : vector<8x128xf32> to vector<8x128xbf16>
      %c0_21 = arith.constant 0 : index
      %c0_22 = arith.constant 0 : index
      %27 = vector.load %arg9[%c0_21, %c0_22] : memref<8x128xbf16, #tpu.memory_space<vmem>>, vector<8x128xbf16>
      tpu.vector_store %arg9[%c0_21, %c0_22], %26 {strides = array<i32>} : memref<8x128xbf16, #tpu.memory_space<vmem>>, vector<8x128xbf16>,
      %28 = arith.truncf %25 : vector<8x128xf32> to vector<8x128xbf16>
      %c0_23 = arith.constant 0 : index
      %c0_24 = arith.constant 0 : index
      %29 = vector.load %arg7[%c0_23, %c0_24] : memref<128x128xbf16, #tpu.memory_space<vmem>>, vector<128x128xbf16>
      %cst_25 = arith.constant dense<0.000000e+00> : vector<8x128xf32>
      %30 = tpu.matmul %28, %29, %cst_25 {dimension_numbers = #tpu.dot_dimension_numbers<[1], [0], [0], [1], [0, 0, 1, 1], [], []>} : vector<8x128xbf16>, vector<128x128xbf16>, vector<8x128xf32> -> vector<8x128xf32>
      %c0_26 = arith.constant 0 : index
      %c0_27 = arith.constant 0 : index
      %31 = vector.load %arg8[%c0_26, %c0_27] : memref<1x128xf32, #tpu.memory_space<vmem>>, vector<1x128xf32>
      %32 = vector.broadcast %31 : vector<1x128xf32> to vector<8x128xf32>
      %33 = arith.addf %30, %32 : vector<8x128xf32>
      %c0_28 = arith.constant 0 : index
      %c0_29 = arith.constant 0 : index
      %34 = vector.load %arg10[%c0_28, %c0_29] : memref<8x128xf32, #tpu.memory_space<vmem>>, vector<8x128xf32>
      tpu.vector_store %arg10[%c0_28, %c0_29], %33 {strides = array<i32>} : memref<8x128xf32, #tpu.memory_space<vmem>>, vector<8x128xf32>,
    } else {
    }
    return
  }
  func.func @transform_0(%arg0: i32, %arg1: i32) -> (i32, i32) {
    %c0_i32 = arith.constant 0 : i32
    return %arg0, %arg1 : i32, i32
  }
  func.func @transform_1(%arg0: i32, %arg1: i32) -> (i32, i32) {
    %c0_i32 = arith.constant 0 : i32
    %c0_i32_0 = arith.constant 0 : i32
    return %arg1, %c0_i32 : i32, i32
  }
  func.func @transform_2(%arg0: i32, %arg1: i32) -> (i32, i32) {
    %c0_i32 = arith.constant 0 : i32
    %c0_i32_0 = arith.constant 0 : i32
    %c0_i32_1 = arith.constant 0 : i32
    return %c0_i32, %c0_i32_0 : i32, i32
  }
  func.func @transform_3(%arg0: i32, %arg1: i32) -> (i32, i32) {
    %c0_i32 = arith.constant 0 : i32
    %c0_i32_0 = arith.constant 0 : i32
    %c0_i32_1 = arith.constant 0 : i32
    return %c0_i32, %c0_i32_0 : i32, i32
  }
  func.func @transform_4(%arg0: i32, %arg1: i32) -> (i32, i32) {
    %c0_i32 = arith.constant 0 : i32
    %c0_i32_0 = arith.constant 0 : i32
    %c0_i32_1 = arith.constant 0 : i32
    return %c0_i32, %c0_i32_0 : i32, i32
  }
  func.func @transform_5(%arg0: i32, %arg1: i32) -> (i32, i32) {
    %c0_i32 = arith.constant 0 : i32
    %c0_i32_0 = arith.constant 0 : i32
    %c0_i32_1 = arith.constant 0 : i32
    return %c0_i32, %c0_i32_0 : i32, i32
  }
  func.func @transform_6(%arg0: i32, %arg1: i32) -> (i32, i32) {
    %c0_i32 = arith.constant 0 : i32
    %c0_i32_0 = arith.constant 0 : i32
    %c0_i32_1 = arith.constant 0 : i32
    return %c0_i32, %c0_i32_0 : i32, i32
  }
  func.func @transform_7(%arg0: i32, %arg1: i32) -> (i32, i32) {
    %c0_i32 = arith.constant 0 : i32
    %c0_i32_0 = arith.constant 0 : i32
    return %arg0, %c0_i32 : i32, i32
  }
  func.func @transform_8(%arg0: i32, %arg1: i32) -> (i32, i32) {
    %c0_i32 = arith.constant 0 : i32
    %c0_i32_0 = arith.constant 0 : i32
    return %arg0, %c0_i32 : i32, i32
  }
}

</mosaic_0001>

<llo_original>
// kernel: tpu_custom_call.1
$region0: #{tpu_custom_call.1}
  #allocation0 [shape = 'u32[]', space=smem, size = 0x4, offset = 0x4, fixed_abs, tag = 'smem constant byte address 0x4 - core index']
  #allocation1 [shape = 'u32[144,128]{1,0:T(1,128)}', space=vmem, size = 0x12000, scoped, tag = 'internal scratch']
  #allocation2 [shape = 'f32[8,128]{1,0:T(8,128)}', space=vmem, size = 0x1000, scoped, tag = 'scratch operand']
  %s0 = inlined_call_operand.hbm [shape: bf16[8,256], index: 0, kind: input, shape index: {}]
  %s1 = inlined_call_operand.hbm [shape: bf16[256,128], index: 1, kind: input, shape index: {}]
  %s2 = inlined_call_operand.vmem [shape: f32[1,128], index: 2, kind: input, shape index: {}]
  %s3 = inlined_call_operand.hbm [shape: bf16[128,128], index: 3, kind: input, shape index: {}]
  %s4 = inlined_call_operand.vmem [shape: f32[1,128], index: 4, kind: input, shape index: {}]
  %s5 = inlined_call_operand.hbm [shape: bf16[128,128], index: 5, kind: input, shape index: {}]
  %s6 = inlined_call_operand.vmem [shape: f32[1,128], index: 6, kind: input, shape index: {}]
  %s7 = inlined_call_operand.hbm [shape: bf16[8,128], index: 7, kind: output, shape index: {0}]
  %s8 = inlined_call_operand.hbm [shape: f32[8,128], index: 8, kind: output, shape index: {1}]
  %9 = xla_tuple %s7, %s8
  %s10 = sld [smem:[#allocation0]]
  $region70: #{tpu_custom_call.1} parent=0
    _
  %s12 = ssub.s32 1, %s10
  %s13 = scalar_select 0, %s12, %s10
  $region1: #{tpu_custom_call.1} parent=0
    #allocation3 [shape = 'u8[4096]{0}', space=vmem, size = 0x1000, scoped, tag = 'input window, operand 0, single buffered']
    #allocation4 [shape = 's32[1]{0}', space=sflag, size = 0x4, scoped, tag = 'scoped memory for tpu_custom_call.1']
    #allocation5 [shape = 's32[1]{0}', space=sflag, size = 0x4, scoped, tag = 'scoped memory for tpu_custom_call.1']
    #allocation6 [shape = 'u8[65536]{0}', space=vmem, size = 0x10000, scoped, tag = 'input window, operand 1, single buffered']
    #allocation7 [shape = 's32[1]{0}', space=sflag, size = 0x4, scoped, tag = 'scoped memory for tpu_custom_call.1']
    #allocation8 [shape = 'u8[32768]{0}', space=vmem, size = 0x8000, scoped, tag = 'input window, operand 3, single buffered']
    #allocation9 [shape = 'u8[32768]{0}', space=vmem, size = 0x8000, scoped, tag = 'input window, operand 5, single buffered']
    #allocation10 [shape = 's32[1]{0}', space=sflag, size = 0x4, scoped, tag = 'scoped memory for tpu_custom_call.1']
    #allocation11 [shape = 'u8[2048]{0}', space=vmem, size = 0x800, scoped, tag = 'output window, operand 0, single buffered']
    #allocation12 [shape = 'u8[4096]{0}', space=vmem, size = 0x1000, scoped, tag = 'output window, operand 1, single buffered']
    #allocation13 [shape = 's32[1]{0}', space=sflag, size = 0x4, scoped, tag = 'scoped memory for tpu_custom_call.1']
    %14 = vsyncpa [#allocation4], 0
    %15 = vsyncpa [#allocation7], 0
    %16 = vsyncpa [#allocation10], 0
    %17 = vsyncpa [#allocation5], 0
    %18 = vsyncpa [#allocation13], 0
    // Predicated region
    $region2: #{tpu_custom_call.1} parent=1 // pred_check
      _
    $region3: #{tpu_custom_call.1} parent=1 // pred_check_branch
      %20 = sbr.rel (0) target = $region5
    $region4: #{tpu_custom_call.1} parent=1 // pred_region
      %s22 = ssub.s32 128, 128
      %23 = vsyncadd [#allocation4], %s22
      %s25 = sshll.u32 [#allocation3], 4
      %s26 = int_to_ptr.vmem [resolvable:$true] %s25
      %28 = dma.hbm_to_vmem [thread:$0]  %s0, 128, %s26, [#allocation4]
    $region5: #{tpu_custom_call.1} parent=1 // pred_fallthru
      _
    // Predicated region
    $region6: #{tpu_custom_call.1} parent=1 // pred_check
      _
    $region7: #{tpu_custom_call.1} parent=1 // pred_check_branch
      %30 = sbr.rel (0) target = $region9
    $region8: #{tpu_custom_call.1} parent=1 // pred_region
      %s32 = ssub.s32 2048, 2048
      %33 = vsyncadd [#allocation7], %s32
      %s34 = sshll.u32 [#allocation6], 4
      %s35 = int_to_ptr.vmem [resolvable:$true] %s34
      %40 = dma.hbm_to_vmem [thread:$0]  %s1, 2048, %s35, [#allocation7], 64, 64, 4
    $region9: #{tpu_custom_call.1} parent=1 // pred_fallthru
      _
    // Predicated region
    $region10: #{tpu_custom_call.1} parent=1 // pred_check
      _
    $region11: #{tpu_custom_call.1} parent=1 // pred_check_branch
      %42 = sbr.rel (0) target = $region13
    $region12: #{tpu_custom_call.1} parent=1 // pred_region
      _
    $region13: #{tpu_custom_call.1} parent=1 // pred_fallthru
      _
    // Predicated region
    $region14: #{tpu_custom_call.1} parent=1 // pred_check
      _
    $region15: #{tpu_custom_call.1} parent=1 // pred_check_branch
      %44 = sbr.rel (0) target = $region17
    $region16: #{tpu_custom_call.1} parent=1 // pred_region
      %s46 = ssub.s32 1024, 1024
      %47 = vsyncadd [#allocation7], %s46
      %s48 = sshll.u32 [#allocation8], 4
      %s49 = int_to_ptr.vmem [resolvable:$true] %s48
      %54 = dma.hbm_to_vmem [thread:$0]  %s3, 1024, %s49, [#allocation7], 64, 64, 4
    $region17: #{tpu_custom_call.1} parent=1 // pred_fallthru
      _
    // Predicated region
    $region18: #{tpu_custom_call.1} parent=1 // pred_check
      _
    $region19: #{tpu_custom_call.1} parent=1 // pred_check_branch
      %56 = sbr.rel (0) target = $region21
    $region20: #{tpu_custom_call.1} parent=1 // pred_region
      _
    $region21: #{tpu_custom_call.1} parent=1 // pred_fallthru
      _
    // Predicated region
    $region22: #{tpu_custom_call.1} parent=1 // pred_check
      _
    $region23: #{tpu_custom_call.1} parent=1 // pred_check_branch
      %58 = sbr.rel (0) target = $region25
    $region24: #{tpu_custom_call.1} parent=1 // pred_region
      %s60 = ssub.s32 1024, 1024
      %61 = vsyncadd [#allocation10], %s60
      %s62 = sshll.u32 [#allocation9], 4
      %s63 = int_to_ptr.vmem [resolvable:$true] %s62
      %68 = dma.hbm_to_vmem [thread:$0]  %s5, 1024, %s63, [#allocation10], 64, 64, 4
    $region25: #{tpu_custom_call.1} parent=1 // pred_fallthru
      _
    // Predicated region
    $region26: #{tpu_custom_call.1} parent=1 // pred_check
      _
    $region27: #{tpu_custom_call.1} parent=1 // pred_check_branch
      %70 = sbr.rel (0) target = $region29
    $region28: #{tpu_custom_call.1} parent=1 // pred_region
      _
    $region29: #{tpu_custom_call.1} parent=1 // pred_fallthru
      _
    // Predicated region
    $region30: #{tpu_custom_call.1} parent=1 // pred_check
      _
    $region31: #{tpu_custom_call.1} parent=1 // pred_check_branch
      %72 = sbr.rel (0) target = $region33
    $region32: #{tpu_custom_call.1} parent=1 // pred_region
      %73 = dma.done [#allocation4], 128
    $region33: #{tpu_custom_call.1} parent=1 // pred_fallthru
      _
    // Predicated region
    $region34: #{tpu_custom_call.1} parent=1 // pred_check
      _
    $region35: #{tpu_custom_call.1} parent=1 // pred_check_branch
      %75 = sbr.rel (0) target = $region37
    $region36: #{tpu_custom_call.1} parent=1 // pred_region
      %76 = dma.done [#allocation7], 2048
    $region37: #{tpu_custom_call.1} parent=1 // pred_fallthru
      _
    // Predicated region
    $region38: #{tpu_custom_call.1} parent=1 // pred_check
      _
    $region39: #{tpu_custom_call.1} parent=1 // pred_check_branch
      %78 = sbr.rel (0) target = $region41
    $region40: #{tpu_custom_call.1} parent=1 // pred_region
      %79 = dma.done [#allocation7], 1024
    $region41: #{tpu_custom_call.1} parent=1 // pred_fallthru
      _
    // Predicated region
    $region42: #{tpu_custom_call.1} parent=1 // pred_check
      _
    $region43: #{tpu_custom_call.1} parent=1 // pred_check_branch
      %81 = sbr.rel (0) target = $region45
    $region44: #{tpu_custom_call.1} parent=1 // pred_region
      %82 = dma.done [#allocation10], 1024
    $region45: #{tpu_custom_call.1} parent=1 // pred_fallthru
      _
    %p84 = scmp.eq.s32.totalorder 0, 0
    // Predicated region
    $region46: #{tpu_custom_call.1} parent=1 // pred_check
      %p85 = pneg %p84
    $region47: #{tpu_custom_call.1} parent=1 // pred_check_branch
      %87 = sbr.rel (%p85) target = $region49
    $region48: #{tpu_custom_call.1} parent=1 // pred_region
      %88 = vst [vmem:[#allocation2] sm:$0xff] 0.0
    $region49: #{tpu_custom_call.1} parent=1 // pred_fallthru
      _
    %v89 = vld [vmem:[#allocation2] sm:$0xff]
    %v90 = vld [vmem:[#allocation3] sm:$0xff]
    %v91 = vld [vmem:[#allocation6] sm:$0xf]
    %v92 = vld [vmem:[#allocation6 + $0x4] sm:$0xf]
    %v93 = vld [vmem:[#allocation6 + $0x8] sm:$0xf]
    %v94 = vld [vmem:[#allocation6 + $0xc] sm:$0xf]
    %v95 = vld [vmem:[#allocation6 + $0x10] sm:$0xf]
    %v96 = vld [vmem:[#allocation6 + $0x14] sm:$0xf]
    %v97 = vld [vmem:[#allocation6 + $0x18] sm:$0xf]
    %v98 = vld [vmem:[#allocation6 + $0x1c] sm:$0xf]
    %v99 = vld [vmem:[#allocation6 + $0x20] sm:$0xf]
    %v100 = vld [vmem:[#allocation6 + $0x24] sm:$0xf]
    %v101 = vld [vmem:[#allocation6 + $0x28] sm:$0xf]
    %v102 = vld [vmem:[#allocation6 + $0x2c] sm:$0xf]
    %v103 = vld [vmem:[#allocation6 + $0x30] sm:$0xf]
    %v104 = vld [vmem:[#allocation6 + $0x34] sm:$0xf]
    %v105 = vld [vmem:[#allocation6 + $0x38] sm:$0xf]
    %v106 = vld [vmem:[#allocation6 + $0x3c] sm:$0xf]
    %v107 = vld [vmem:[#allocation6 + $0x40] sm:$0xf]
    %v108 = vld [vmem:[#allocation6 + $0x44] sm:$0xf]
    %v109 = vld [vmem:[#allocation6 + $0x48] sm:$0xf]
    %v110 = vld [vmem:[#allocation6 + $0x4c] sm:$0xf]
    %v111 = vld [vmem:[#allocation6 + $0x50] sm:$0xf]
    %v112 = vld [vmem:[#allocation6 + $0x54] sm:$0xf]
    %v113 = vld [vmem:[#allocation6 + $0x58] sm:$0xf]
    %v114 = vld [vmem:[#allocation6 + $0x5c] sm:$0xf]
    %v115 = vld [vmem:[#allocation6 + $0x60] sm:$0xf]
    %v116 = vld [vmem:[#allocation6 + $0x64] sm:$0xf]
    %v117 = vld [vmem:[#allocation6 + $0x68] sm:$0xf]
    %v118 = vld [vmem:[#allocation6 + $0x6c] sm:$0xf]
    %v119 = vld [vmem:[#allocation6 + $0x70] sm:$0xf]
    %v120 = vld [vmem:[#allocation6 + $0x74] sm:$0xf]
    %v121 = vld [vmem:[#allocation6 + $0x78] sm:$0xf]
    %v122 = vld [vmem:[#allocation6 + $0x7c] sm:$0xf]
    %v124 = vunpack.c.l.b16 %v90
    %v125 = vunpack.c.h.b16 %v90
    %v126 = vpack.c.b16 %v124, %v124
    %v127 = vpack.c.b16 %v125, %v125
    %v162 = vunpack.c.l.b16 %v91
    %v163 = vunpack.c.l.b16 %v92
    %v164 = vunpack.c.l.b16 %v93
    %v165 = vunpack.c.l.b16 %v94
    %v166 = vunpack.c.l.b16 %v95
    %v167 = vunpack.c.l.b16 %v96
    %v168 = vunpack.c.l.b16 %v97
    %v169 = vunpack.c.l.b16 %v98
    %v170 = vunpack.c.l.b16 %v99
    %v171 = vunpack.c.l.b16 %v100
    %v172 = vunpack.c.l.b16 %v101
    %v173 = vunpack.c.l.b16 %v102
    %v174 = vunpack.c.l.b16 %v103
    %v175 = vunpack.c.l.b16 %v104
    %v176 = vunpack.c.l.b16 %v105
    %v177 = vunpack.c.l.b16 %v106
    %v178 = vunpack.c.l.b16 %v107
    %v179 = vunpack.c.l.b16 %v108
    %v180 = vunpack.c.l.b16 %v109
    %v181 = vunpack.c.l.b16 %v110
    %v182 = vunpack.c.l.b16 %v111
    %v183 = vunpack.c.l.b16 %v112
    %v184 = vunpack.c.l.b16 %v113
    %v185 = vunpack.c.l.b16 %v114
    %v186 = vunpack.c.l.b16 %v115
    %v187 = vunpack.c.l.b16 %v116
    %v188 = vunpack.c.l.b16 %v117
    %v189 = vunpack.c.l.b16 %v118
    %v190 = vunpack.c.l.b16 %v119
    %v191 = vunpack.c.l.b16 %v120
    %v192 = vunpack.c.l.b16 %v121
    %v193 = vunpack.c.l.b16 %v122
    %v194 = vpack.c.b16 %v163, %v162
    %v195 = vpack.c.b16 %v165, %v164
    %v196 = vpack.c.b16 %v167, %v166
    %v197 = vpack.c.b16 %v169, %v168
    %v198 = vpack.c.b16 %v171, %v170
    %v199 = vpack.c.b16 %v173, %v172
    %v200 = vpack.c.b16 %v175, %v174
    %v201 = vpack.c.b16 %v177, %v176
    %v202 = vpack.c.b16 %v179, %v178
    %v203 = vpack.c.b16 %v181, %v180
    %v204 = vpack.c.b16 %v183, %v182
    %v205 = vpack.c.b16 %v185, %v184
    %v206 = vpack.c.b16 %v187, %v186
    %v207 = vpack.c.b16 %v189, %v188
    %v208 = vpack.c.b16 %v191, %v190
    %v209 = vpack.c.b16 %v193, %v192
    %226 = vmatprep.subr.bf16.mxu0 0
    %227 = vmatpush1.bf16.msra.mxu0 %v194
    %228 = vmatprep.subr.bf16.mxu0 0
    %229 = vmatpush1.bf16.msra.mxu0 %v195
    %230 = vmatprep.subr.bf16.mxu0 0
    %231 = vmatpush1.bf16.msra.mxu0 %v196
    %232 = vmatprep.subr.bf16.mxu0 0
    %233 = vmatpush1.bf16.msra.mxu0 %v197
    %234 = vmatprep.subr.bf16.mxu0 0
    %235 = vmatpush1.bf16.msra.mxu0 %v198
    %236 = vmatprep.subr.bf16.mxu0 0
    %237 = vmatpush1.bf16.msra.mxu0 %v199
    %238 = vmatprep.subr.bf16.mxu0 0
    %239 = vmatpush1.bf16.msra.mxu0 %v200
    %240 = vmatprep.subr.bf16.mxu0 0
    %241 = vmatpush1.bf16.msra.mxu0 %v201
    %242 = vmatprep.subr.bf16.mxu0 0
    %243 = vmatpush1.bf16.msra.mxu0 %v202
    %244 = vmatprep.subr.bf16.mxu0 0
    %245 = vmatpush1.bf16.msra.mxu0 %v203
    %246 = vmatprep.subr.bf16.mxu0 0
    %247 = vmatpush1.bf16.msra.mxu0 %v204
    %248 = vmatprep.subr.bf16.mxu0 0
    %249 = vmatpush1.bf16.msra.mxu0 %v205
    %250 = vmatprep.subr.bf16.mxu0 0
    %251 = vmatpush1.bf16.msra.mxu0 %v206
    %252 = vmatprep.subr.bf16.mxu0 0
    %253 = vmatpush1.bf16.msra.mxu0 %v207
    %254 = vmatprep.subr.bf16.mxu0 0
    %255 = vmatpush1.bf16.msra.mxu0 %v208
    %256 = vmatprep.subr.bf16.mxu0 0
    %257 = vmatpush1.bf16.msra.mxu0 %v209
    %258 = vmatprep.mubr.bf16.mxu0 %v127
    %259 = vmatmul.mubr.bf16.gmra.mrb[0].mxu0 %v126
    %v260 = vpop.f32.mrb[0].mxu0
    %v261 = vadd.f32 0.0, %v260
    %v262 = vpop.f32.mrb[0].mxu0
    %v263 = vpop.f32.mrb[0].mxu0
    %v264 = vpop.f32.mrb[0].mxu0
    %265 = vdwg.mxu0
    %v266 = vadd.f32 %v89, %v261
    %267 = vst [vmem:[#allocation2] sm:$0xff] %v266
    // Predicated region
    $region50: #{tpu_custom_call.1} parent=1 // pred_check
      %p268 = pneg %p84
    $region51: #{tpu_custom_call.1} parent=1 // pred_check_branch
      %270 = sbr.rel (%p268) target = $region53
    $region52: #{tpu_custom_call.1} parent=1 // pred_region
      %v271 = vld [vmem:[#allocation2] sm:$0xff]
      %v272 = vld [vmem:[%s2] sm:$0x1]
      %v274 = vlaneseq
      %v275 = vshrl.u32 %v274, 7
      %v276 = vsub.s32 0, %v275
      %v277 = vrot.slane %v272, %v276
      %v279 = vadd.f32 %v271, %v277
      %v280 = vmax.f32 %v279, 0.0
      %v281 = vpack.c.bf16 %v280, %v280
      %v282 = vld [vmem:[#allocation8] sm:$0xf]
      %v283 = vld [vmem:[#allocation8 + $0x4] sm:$0xf]
      %v284 = vld [vmem:[#allocation8 + $0x8] sm:$0xf]
      %v285 = vld [vmem:[#allocation8 + $0xc] sm:$0xf]
      %v286 = vld [vmem:[#allocation8 + $0x10] sm:$0xf]
      %v287 = vld [vmem:[#allocation8 + $0x14] sm:$0xf]
      %v288 = vld [vmem:[#allocation8 + $0x18] sm:$0xf]
      %v289 = vld [vmem:[#allocation8 + $0x1c] sm:$0xf]
      %v290 = vld [vmem:[#allocation8 + $0x20] sm:$0xf]
      %v291 = vld [vmem:[#allocation8 + $0x24] sm:$0xf]
      %v292 = vld [vmem:[#allocation8 + $0x28] sm:$0xf]
      %v293 = vld [vmem:[#allocation8 + $0x2c] sm:$0xf]
      %v294 = vld [vmem:[#allocation8 + $0x30] sm:$0xf]
      %v295 = vld [vmem:[#allocation8 + $0x34] sm:$0xf]
      %v296 = vld [vmem:[#allocation8 + $0x38] sm:$0xf]
      %v297 = vld [vmem:[#allocation8 + $0x3c] sm:$0xf]
      %v298 = vld [vmem:[%s4] sm:$0x1]
      %v300 = vlaneseq
      %v301 = vshrl.u32 %v300, 7
      %v302 = vsub.s32 0, %v301
      %v303 = vrot.slane %v298, %v302
      %v321 = vunpack.c.l.b16 %v282
      %v322 = vunpack.c.l.b16 %v283
      %v323 = vunpack.c.l.b16 %v284
      %v324 = vunpack.c.l.b16 %v285
      %v325 = vunpack.c.l.b16 %v286
      %v326 = vunpack.c.l.b16 %v287
      %v327 = vunpack.c.l.b16 %v288
      %v328 = vunpack.c.l.b16 %v289
      %v329 = vunpack.c.l.b16 %v290
      %v330 = vunpack.c.l.b16 %v291
      %v331 = vunpack.c.l.b16 %v292
      %v332 = vunpack.c.l.b16 %v293
      %v333 = vunpack.c.l.b16 %v294
      %v334 = vunpack.c.l.b16 %v295
      %v335 = vunpack.c.l.b16 %v296
      %v336 = vunpack.c.l.b16 %v297
      %v337 = vpack.c.b16 %v322, %v321
      %v338 = vpack.c.b16 %v324, %v323
      %v339 = vpack.c.b16 %v326, %v325
      %v340 = vpack.c.b16 %v328, %v327
      %v341 = vpack.c.b16 %v330, %v329
      %v342 = vpack.c.b16 %v332, %v331
      %v343 = vpack.c.b16 %v334, %v333
      %v344 = vpack.c.b16 %v336, %v335
      %353 = vmatprep.subr.bf16.mxu0 0
      %354 = vmatpush1.bf16.msra.mxu0 %v337
      %355 = vmatprep.subr.bf16.mxu0 0
      %356 = vmatpush1.bf16.msra.mxu0 %v338
      %357 = vmatprep.subr.bf16.mxu0 0
      %358 = vmatpush1.bf16.msra.mxu0 %v339
      %359 = vmatprep.subr.bf16.mxu0 0
      %360 = vmatpush1.bf16.msra.mxu0 %v340
      %361 = vmatprep.subr.bf16.mxu0 0
      %362 = vmatpush1.bf16.msra.mxu0 %v341
      %363 = vmatprep.subr.bf16.mxu0 0
      %364 = vmatpush1.bf16.msra.mxu0 %v342
      %365 = vmatprep.subr.bf16.mxu0 0
      %366 = vmatpush1.bf16.msra.mxu0 %v343
      %367 = vmatprep.subr.bf16.mxu0 0
      %368 = vmatpush1.bf16.msra.mxu0 %v344
      %369 = vmatprep.subr.bf16.mxu0 0
      %370 = vmatpush1.bf16.msra.mxu0 0
      %371 = vmatprep.subr.bf16.mxu0 0
      %372 = vmatpush1.bf16.msra.mxu0 0
      %373 = vmatprep.subr.bf16.mxu0 0
      %374 = vmatpush1.bf16.msra.mxu0 0
      %375 = vmatprep.subr.bf16.mxu0 0
      %376 = vmatpush1.bf16.msra.mxu0 0
      %377 = vmatprep.subr.bf16.mxu0 0
      %378 = vmatpush1.bf16.msra.mxu0 0
      %379 = vmatprep.subr.bf16.mxu0 0
      %380 = vmatpush1.bf16.msra.mxu0 0
      %381 = vmatprep.subr.bf16.mxu0 0
      %382 = vmatpush1.bf16.msra.mxu0 0
      %383 = vmatprep.subr.bf16.mxu0 0
      %384 = vmatpush1.bf16.msra.mxu0 0
      %385 = vmatprep.mubr.bf16.mxu0 0
      %386 = vmatmul.mubr.bf16.gmra.mrb[0].mxu0 %v281
      %v387 = vpop.f32.mrb[0].mxu0
      %v388 = vadd.f32 %v303, %v387
      %v389 = vpop.f32.mrb[0].mxu0
      %v390 = vpop.f32.mrb[0].mxu0
      %v391 = vpop.f32.mrb[0].mxu0
      %392 = vdwg.mxu0
      %v393 = vmax.f32 %v388, 0.0
      %v394 = vpack.c.bf16 %v393, %v393
      %395 = vst [vmem:[#allocation11] sm:$0xf] %v394
      %v396 = vld [vmem:[#allocation9] sm:$0xf]
      %v397 = vld [vmem:[#allocation9 + $0x4] sm:$0xf]
      %v398 = vld [vmem:[#allocation9 + $0x8] sm:$0xf]
      %v399 = vld [vmem:[#allocation9 + $0xc] sm:$0xf]
      %v400 = vld [vmem:[#allocation9 + $0x10] sm:$0xf]
      %v401 = vld [vmem:[#allocation9 + $0x14] sm:$0xf]
      %v402 = vld [vmem:[#allocation9 + $0x18] sm:$0xf]
      %v403 = vld [vmem:[#allocation9 + $0x1c] sm:$0xf]
      %v404 = vld [vmem:[#allocation9 + $0x20] sm:$0xf]
      %v405 = vld [vmem:[#allocation9 + $0x24] sm:$0xf]
      %v406 = vld [vmem:[#allocation9 + $0x28] sm:$0xf]
      %v407 = vld [vmem:[#allocation9 + $0x2c] sm:$0xf]
      %v408 = vld [vmem:[#allocation9 + $0x30] sm:$0xf]
      %v409 = vld [vmem:[#allocation9 + $0x34] sm:$0xf]
      %v410 = vld [vmem:[#allocation9 + $0x38] sm:$0xf]
      %v411 = vld [vmem:[#allocation9 + $0x3c] sm:$0xf]
      %v412 = vld [vmem:[%s6] sm:$0x1]
      %v414 = vlaneseq
      %v415 = vshrl.u32 %v414, 7
      %v416 = vsub.s32 0, %v415
      %v417 = vrot.slane %v412, %v416
      %v435 = vunpack.c.l.b16 %v396
      %v436 = vunpack.c.l.b16 %v397
      %v437 = vunpack.c.l.b16 %v398
      %v438 = vunpack.c.l.b16 %v399
      %v439 = vunpack.c.l.b16 %v400
      %v440 = vunpack.c.l.b16 %v401
      %v441 = vunpack.c.l.b16 %v402
      %v442 = vunpack.c.l.b16 %v403
      %v443 = vunpack.c.l.b16 %v404
      %v444 = vunpack.c.l.b16 %v405
      %v445 = vunpack.c.l.b16 %v406
      %v446 = vunpack.c.l.b16 %v407
      %v447 = vunpack.c.l.b16 %v408
      %v448 = vunpack.c.l.b16 %v409
      %v449 = vunpack.c.l.b16 %v410
      %v450 = vunpack.c.l.b16 %v411
      %v451 = vpack.c.b16 %v436, %v435
      %v452 = vpack.c.b16 %v438, %v437
      %v453 = vpack.c.b16 %v440, %v439
      %v454 = vpack.c.b16 %v442, %v441
      %v455 = vpack.c.b16 %v444, %v443
      %v456 = vpack.c.b16 %v446, %v445
      %v457 = vpack.c.b16 %v448, %v447
      %v458 = vpack.c.b16 %v450, %v449
      %467 = vmatprep.subr.bf16.mxu0 0
      %468 = vmatpush1.bf16.msra.mxu0 %v451
      %469 = vmatprep.subr.bf16.mxu0 0
      %470 = vmatpush1.bf16.msra.mxu0 %v452
      %471 = vmatprep.subr.bf16.mxu0 0
      %472 = vmatpush1.bf16.msra.mxu0 %v453
      %473 = vmatprep.subr.bf16.mxu0 0
      %474 = vmatpush1.bf16.msra.mxu0 %v454
      %475 = vmatprep.subr.bf16.mxu0 0
      %476 = vmatpush1.bf16.msra.mxu0 %v455
      %477 = vmatprep.subr.bf16.mxu0 0
      %478 = vmatpush1.bf16.msra.mxu0 %v456
      %479 = vmatprep.subr.bf16.mxu0 0
      %480 = vmatpush1.bf16.msra.mxu0 %v457
      %481 = vmatprep.subr.bf16.mxu0 0
      %482 = vmatpush1.bf16.msra.mxu0 %v458
      %483 = vmatprep.subr.bf16.mxu0 0
      %484 = vmatpush1.bf16.msra.mxu0 0
      %485 = vmatprep.subr.bf16.mxu0 0
      %486 = vmatpush1.bf16.msra.mxu0 0
      %487 = vmatprep.subr.bf16.mxu0 0
      %488 = vmatpush1.bf16.msra.mxu0 0
      %489 = vmatprep.subr.bf16.mxu0 0
      %490 = vmatpush1.bf16.msra.mxu0 0
      %491 = vmatprep.subr.bf16.mxu0 0
      %492 = vmatpush1.bf16.msra.mxu0 0
      %493 = vmatprep.subr.bf16.mxu0 0
      %494 = vmatpush1.bf16.msra.mxu0 0
      %495 = vmatprep.subr.bf16.mxu0 0
      %496 = vmatpush1.bf16.msra.mxu0 0
      %497 = vmatprep.subr.bf16.mxu0 0
      %498 = vmatpush1.bf16.msra.mxu0 0
      %499 = vmatprep.mubr.bf16.mxu0 0
      %500 = vmatmul.mubr.bf16.gmra.mrb[0].mxu0 %v394
      %v501 = vpop.f32.mrb[0].mxu0
      %v502 = vadd.f32 %v417, %v501
      %v503 = vpop.f32.mrb[0].mxu0
      %v504 = vpop.f32.mrb[0].mxu0
      %v505 = vpop.f32.mrb[0].mxu0
      %506 = vdwg.mxu0
      %507 = vst [vmem:[#allocation12] sm:$0xff] %v502
    $region53: #{tpu_custom_call.1} parent=1 // pred_fallthru
      _
    // Predicated region
    $region54: #{tpu_custom_call.1} parent=1 // pred_check
      _
    $region55: #{tpu_custom_call.1} parent=1 // pred_check_branch
      %509 = sbr.rel (0) target = $region57
    $region56: #{tpu_custom_call.1} parent=1 // pred_region
      %s511 = ssub.s32 64, 64
      %512 = vsyncadd [#allocation5], %s511
      %s514 = sshll.u32 [#allocation11], 4
      %s515 = int_to_ptr.vmem [resolvable:$true] %s514
      %517 = dma.vmem_to_hbm [thread:$0]  %s515, 64, %s7, [#allocation5]
    $region57: #{tpu_custom_call.1} parent=1 // pred_fallthru
      _
    // Predicated region
    $region58: #{tpu_custom_call.1} parent=1 // pred_check
      _
    $region59: #{tpu_custom_call.1} parent=1 // pred_check_branch
      %519 = sbr.rel (0) target = $region61
    $region60: #{tpu_custom_call.1} parent=1 // pred_region
      %s521 = ssub.s32 128, 128
      %522 = vsyncadd [#allocation13], %s521
      %s524 = sshll.u32 [#allocation12], 4
      %s525 = int_to_ptr.vmem [resolvable:$true] %s524
      %527 = dma.vmem_to_hbm [thread:$0]  %s525, 128, %s8, [#allocation13]
    $region61: #{tpu_custom_call.1} parent=1 // pred_fallthru
      _
    // Predicated region
    $region62: #{tpu_custom_call.1} parent=1 // pred_check
      _
    $region63: #{tpu_custom_call.1} parent=1 // pred_check_branch
      %529 = sbr.rel (0) target = $region65
    $region64: #{tpu_custom_call.1} parent=1 // pred_region
      %530 = dma.done [#allocation5], 64
    $region65: #{tpu_custom_call.1} parent=1 // pred_fallthru
      _
    // Predicated region
    $region66: #{tpu_custom_call.1} parent=1 // pred_check
      _
    $region67: #{tpu_custom_call.1} parent=1 // pred_check_branch
      %532 = sbr.rel (0) target = $region69
    $region68: #{tpu_custom_call.1} parent=1 // pred_region
      %533 = dma.done [#allocation13], 128
    $region69: #{tpu_custom_call.1} parent=1 // pred_fallthru
      _
    %534 = vsyncpa [#allocation4], 1
    %535 = vsyncpa [#allocation7], 1
    %536 = vsyncpa [#allocation10], 1
    %537 = vsyncpa [#allocation5], 1
    %538 = vsyncpa [#allocation13], 1

</llo_original>
